<compile_context>
chip_gen: v7x
topology: tpu7x:2x2x1
jax: 0.10.0
libtpu: 0.0.40
codegen_flags: <defaults>
</compile_context>

<pallas_src>
import functools

import jax
import jax.numpy as jnp
from jax.experimental import pallas as pl
from jax.experimental.pallas import tpu as pltpu

LANE = 128            # lane width: hidden feature dims padded to multiples of this
SUBLANE = 8           # sublane width: batch tiles are multiples of this
MAX_TB = 2048         # batch-tile cap (~1 MiB per f32 tile at width 128)
MIN_SPLIT_ROWS = 128  # once B >= 2*this, force >= 2 grid steps (v7x has 2 TCs)


def _round_up(x, m):
    return ((x + m - 1) // m) * m


def _resmlp_kernel(x_ref, *refs, n_layers, residual_flags):
    """Whole ResMLP fused.  refs = (w0, b0, ..., w_{L-1}, b_{L-1}, o_ref).

    Layer i: y = h @ W_i + b_i; hidden layers apply tanh and (if widths match)
    a residual add.  All elementwise math is f32 (v5e-safe); the dot runs at
    the weights' storage dtype (f32 = exact, bf16 = MXU-native if opted in).
    """
    o_ref = refs[-1]
    h = x_ref[...].astype(jnp.float32)
    for i in range(n_layers):
        w = refs[2 * i][...]
        b = refs[2 * i + 1][...]                      # (1, Dout), broadcasts
        y = jnp.dot(h.astype(w.dtype), w, preferred_element_type=jnp.float32) + b
        if i < n_layers - 1:
            y = jnp.tanh(y)                           # EUP
            if residual_flags[i]:
                y = y + h                             # skip connection
        h = y
    o_ref[...] = h.astype(o_ref.dtype)


def init_shared_mmv_embed_params(key, qdim, hidden_sizes):
    """torch.nn.Linear-style init.  Widths: qdim -> hidden_sizes[:-1] -> hidden_sizes[-1]."""
    sizes = [qdim] + list(hidden_sizes)
    params = []
    for din, dout in zip(sizes[:-1], sizes[1:]):
        key, kw, kb = jax.random.split(key, 3)
        bound = 1.0 / float(din) ** 0.5
        w = jax.random.uniform(kw, (dout, din), jnp.float32, -bound, bound)  # torch (out, in)
        b = jax.random.uniform(kb, (dout,), jnp.float32, -bound, bound)
        params.append((w, b))
    return params


def prepare_params(params, weight_dtype=jnp.float32):
    """One-time prep outside the hot path.

    * transpose torch-layout (out, in) weights to (Din, Dout)
    * pad HIDDEN feature dims to lane multiples; zero padding keeps the math
      exact (padded lanes stay 0 through matmul, bias, tanh and residual)
    * the streamed input dim (layer 0) and the final output dim keep their
      natural width when < 128 so HBM traffic is not inflated
    * optional bf16 weight storage for v6e/v7x; padding stays zero after cast
    """
    n = len(params)
    douts = [w.shape[0] for (w, _) in params]
    dins = [w.shape[1] for (w, _) in params]
    residual_flags = tuple((i < n - 1) and (dins[i] == douts[i]) for i in range(n))

    # Padded output width per layer (final layer keeps natural width if < LANE).
    dout_p = [
        _round_up(d, LANE) if (i < n - 1 or d >= LANE) else d
        for i, d in enumerate(douts)
    ]
    # Padded input width per layer: chained to previous layer's padded output;
    # layer 0 keeps qdim unless a layer-0 residual forces width matching.
    din_p = [dout_p[0] if residual_flags[0] else dins[0]]
    din_p += [dout_p[i - 1] for i in range(1, n)]

    prepared = []
    for i, (w, b) in enumerate(params):
        w_t = (
            jnp.zeros((din_p[i], dout_p[i]), jnp.float32)
            .at[: dins[i], : douts[i]].set(w.T)
            .astype(weight_dtype)
        )
        b_p = jnp.zeros((1, dout_p[i]), jnp.float32).at[:, : douts[i]].set(b)
        prepared.append((w_t, b_p))
    return prepared, residual_flags, douts[-1]


def shared_mmv_embed(q, prepared, residual_flags, out_dim):
    """Forward pass of SharedMMVEmbed.  q: (B, qdim) -> (B, out_dim)."""
    B, qdim = q.shape
    n_layers = len(prepared)
    din0_p = prepared[0][0].shape[0]
    dout_last_p = prepared[-1][0].shape[1]

    # Only pad q's feature dim if a layer-0 residual forced width matching.
    q_in = q if din0_p == qdim else jnp.pad(q, ((0, 0), (0, din0_p - qdim)))

    # Balanced batch tiles: at most ~7 wasted rows per tile, and >= 2 tiles once
    # B is big enough to feed both v7x TensorCores (harmless on v5e/v6e).
    n_tiles = pl.cdiv(B, MAX_TB)
    if B >= 2 * MIN_SPLIT_ROWS:
        n_tiles = max(n_tiles, 2)
    tb = _round_up(pl.cdiv(B, n_tiles), SUBLANE)
    n_blocks = pl.cdiv(B, tb)
    # No batch pre-pad: the boundary block's out-of-range rows are garbage, but
    # rows are independent and OOB output rows are dropped by the pipeline.

    kernel = functools.partial(
        _resmlp_kernel, n_layers=n_layers, residual_flags=residual_flags
    )

    in_specs = [pl.BlockSpec((tb, din0_p), lambda i: (i, 0))]
    flat_args = [q_in]
    for w, b in prepared:
        # Grid-invariant: fetched once, stays VMEM-resident across batch tiles.
        in_specs.append(pl.BlockSpec(w.shape, lambda i: (0, 0)))
        in_specs.append(pl.BlockSpec(b.shape, lambda i: (0, 0)))
        flat_args.extend([w, b])

    # Advisory cost estimate so XLA schedules this small call sensibly.
    itemsize = q.dtype.itemsize
    w_bytes = sum(
        w.size * w.dtype.itemsize + b.size * b.dtype.itemsize for w, b in prepared
    )
    flops = 2 * B * sum(int(w.shape[0]) * int(w.shape[1]) for w, _ in prepared)
    transcendentals = B * sum(int(w.shape[1]) for w, _ in prepared[:-1])
    bytes_accessed = B * din0_p * itemsize + int(w_bytes) + B * dout_last_p * itemsize
    cost = pl.CostEstimate(
        flops=flops, transcendentals=transcendentals, bytes_accessed=bytes_accessed
    )

    # Explicit VMEM budget: double-buffered in/out tiles + (worst case double-
    # buffered) pinned weights + f32 activation working set, with 2x headroom.
    # Never below the 32 MiB scoped default; capped at 56 MiB (valid on v7x).
    max_w = max([din0_p] + [int(w.shape[1]) for w, _ in prepared])
    vmem_est = (
        2 * tb * (din0_p + dout_last_p) * itemsize
        + 2 * int(w_bytes)
        + 4 * tb * max_w * 4
    )
    vmem_limit = int(min(max(2 * vmem_est, 32 * 1024 * 1024), 56 * 1024 * 1024))

    out = pl.pallas_call(
        kernel,
        out_shape=jax.ShapeDtypeStruct((B, dout_last_p), q.dtype),
        grid=(n_blocks,),
        in_specs=in_specs,
        out_specs=pl.BlockSpec((tb, dout_last_p), lambda i: (i, 0)),
        compiler_params=pltpu.CompilerParams(
            dimension_semantics=("parallel",),
            vmem_limit_bytes=vmem_limit,
        ),
        cost_estimate=cost,
    )(*flat_args)

    # Slice off lane padding only if the final width was padded (>= 128 case).
    return out if dout_last_p == out_dim else out[:, :out_dim]


def _reference(q, params):
    """Pure-JAX reference for correctness checking (unpadded math)."""
    h = q
    n = len(params)
    for i, (w, b) in enumerate(params):
        is_last = i == n - 1
        y = h @ w.T + b
        if not is_last:
            y = jnp.tanh(y)
            if w.shape[0] == w.shape[1]:
                y = y + h
        h = y
    return h


if __name__ == "__main__":
    # Small shapes consistent with the module: q is (batch, qdim).
    B, QDIM = 8, 8
    HIDDEN_SIZES = [32, 32, 16]  # hidden widths [32, 32], embed dim 16

    key = jax.random.PRNGKey(0)
    key, kq = jax.random.split(key)
    q = jax.random.normal(kq, (B, QDIM), dtype=jnp.float32)

    params = init_shared_mmv_embed_params(jax.random.PRNGKey(0), QDIM, HIDDEN_SIZES)
    # weight_dtype=jnp.bfloat16 is the recommended storage on v6e/v7x; keep f32
    # here so the demo matches the f32 reference exactly.
    prepared, residual_flags, out_dim = prepare_params(params, weight_dtype=jnp.float32)

    out = shared_mmv_embed(q, prepared, residual_flags, out_dim)
    out = jax.block_until_ready(out)

    ref = _reference(q, params)
    assert out.shape == (B, HIDDEN_SIZES[-1]), out.shape
    assert jnp.allclose(out, ref, atol=1e-5, rtol=1e-5), "mismatch vs reference"

    print("KERNEL_OK")
</pallas_src>

<mosaic_0001>
module attributes {stable_mosaic.version = 11 : i64} {
  func.func @_resmlp_kernel(%arg0: i32, %arg1: memref<8x8xf32, #tpu.memory_space<vmem>>, %arg2: memref<8x128xf32, #tpu.memory_space<vmem>>, %arg3: memref<1x128xf32, #tpu.memory_space<vmem>>, %arg4: memref<128x128xf32, #tpu.memory_space<vmem>>, %arg5: memref<1x128xf32, #tpu.memory_space<vmem>>, %arg6: memref<128x16xf32, #tpu.memory_space<vmem>>, %arg7: memref<1x16xf32, #tpu.memory_space<vmem>>, %arg8: memref<8x16xf32, #tpu.memory_space<vmem>>) attributes {dimension_semantics = [#tpu.dimension_semantics<parallel>], iteration_bounds = array<i64: 1>, scalar_prefetch = 0 : i64, scratch_operands = 0 : i64, tpu.core_type = #tpu.core_type<tc>, window_params = [{transform_indices = @transform_0, window_bounds = array<i64: 8, 8>}, {pipeline_mode = #tpu.pipeline_mode<synchronous>, transform_indices = @transform_1, window_bounds = array<i64: 8, 128>}, {pipeline_mode = #tpu.pipeline_mode<synchronous>, transform_indices = @transform_2, window_bounds = array<i64: 1, 128>}, {pipeline_mode = #tpu.pipeline_mode<synchronous>, transform_indices = @transform_3, window_bounds = array<i64: 128, 128>}, {pipeline_mode = #tpu.pipeline_mode<synchronous>, transform_indices = @transform_4, window_bounds = array<i64: 1, 128>}, {pipeline_mode = #tpu.pipeline_mode<synchronous>, transform_indices = @transform_5, window_bounds = array<i64: 128, 16>}, {pipeline_mode = #tpu.pipeline_mode<synchronous>, transform_indices = @transform_6, window_bounds = array<i64: 1, 16>}, {transform_indices = @transform_7, window_bounds = array<i64: 8, 16>}]} {
    %c0 = arith.constant 0 : index
    %c0_0 = arith.constant 0 : index
    %0 = vector.load %arg1[%c0, %c0_0] : memref<8x8xf32, #tpu.memory_space<vmem>>, vector<8x8xf32>
    %c0_1 = arith.constant 0 : index
    %c0_2 = arith.constant 0 : index
    %1 = vector.load %arg2[%c0_1, %c0_2] : memref<8x128xf32, #tpu.memory_space<vmem>>, vector<8x128xf32>
    %c0_3 = arith.constant 0 : index
    %c0_4 = arith.constant 0 : index
    %2 = vector.load %arg3[%c0_3, %c0_4] : memref<1x128xf32, #tpu.memory_space<vmem>>, vector<1x128xf32>
    %cst = arith.constant dense<0.000000e+00> : vector<8x128xf32>
    %3 = tpu.matmul %0, %1, %cst {dimension_numbers = #tpu.dot_dimension_numbers<[1], [0], [0], [1], [0, 0, 1, 1], [], []>} : vector<8x8xf32>, vector<8x128xf32>, vector<8x128xf32> -> vector<8x128xf32>
    %4 = vector.broadcast %2 : vector<1x128xf32> to vector<8x128xf32>
    %5 = arith.addf %3, %4 : vector<8x128xf32>
    %6 = math.tanh %5 : vector<8x128xf32>
    %c0_5 = arith.constant 0 : index
    %c0_6 = arith.constant 0 : index
    %7 = vector.load %arg4[%c0_5, %c0_6] : memref<128x128xf32, #tpu.memory_space<vmem>>, vector<128x128xf32>
    %c0_7 = arith.constant 0 : index
    %c0_8 = arith.constant 0 : index
    %8 = vector.load %arg5[%c0_7, %c0_8] : memref<1x128xf32, #tpu.memory_space<vmem>>, vector<1x128xf32>
    %cst_9 = arith.constant dense<0.000000e+00> : vector<8x128xf32>
    %9 = tpu.matmul %6, %7, %cst_9 {dimension_numbers = #tpu.dot_dimension_numbers<[1], [0], [0], [1], [0, 0, 1, 1], [], []>} : vector<8x128xf32>, vector<128x128xf32>, vector<8x128xf32> -> vector<8x128xf32>
    %10 = vector.broadcast %8 : vector<1x128xf32> to vector<8x128xf32>
    %11 = arith.addf %9, %10 : vector<8x128xf32>
    %12 = math.tanh %11 : vector<8x128xf32>
    %13 = arith.addf %12, %6 : vector<8x128xf32>
    %c0_10 = arith.constant 0 : index
    %c0_11 = arith.constant 0 : index
    %14 = vector.load %arg6[%c0_10, %c0_11] : memref<128x16xf32, #tpu.memory_space<vmem>>, vector<128x16xf32>
    %c0_12 = arith.constant 0 : index
    %c0_13 = arith.constant 0 : index
    %15 = vector.load %arg7[%c0_12, %c0_13] : memref<1x16xf32, #tpu.memory_space<vmem>>, vector<1x16xf32>
    %cst_14 = arith.constant dense<0.000000e+00> : vector<8x16xf32>
    %16 = tpu.matmul %13, %14, %cst_14 {dimension_numbers = #tpu.dot_dimension_numbers<[1], [0], [0], [1], [0, 0, 1, 1], [], []>} : vector<8x128xf32>, vector<128x16xf32>, vector<8x16xf32> -> vector<8x16xf32>
    %17 = vector.broadcast %15 : vector<1x16xf32> to vector<8x16xf32>
    %18 = arith.addf %16, %17 : vector<8x16xf32>
    %c0_15 = arith.constant 0 : index
    %c0_16 = arith.constant 0 : index
    %19 = vector.load %arg8[%c0_15, %c0_16] : memref<8x16xf32, #tpu.memory_space<vmem>>, vector<8x16xf32>
    tpu.vector_store %arg8[%c0_15, %c0_16], %18 {strides = array<i32>} : memref<8x16xf32, #tpu.memory_space<vmem>>, vector<8x16xf32>,
    return
  }
  func.func @transform_0(%arg0: i32) -> (i32, i32) {
    %c0_i32 = arith.constant 0 : i32
    %c0_i32_0 = arith.constant 0 : i32
    return %arg0, %c0_i32 : i32, i32
  }
  func.func @transform_1(%arg0: i32) -> (i32, i32) {
    %c0_i32 = arith.constant 0 : i32
    %c0_i32_0 = arith.constant 0 : i32
    %c0_i32_1 = arith.constant 0 : i32
    return %c0_i32, %c0_i32_0 : i32, i32
  }
  func.func @transform_2(%arg0: i32) -> (i32, i32) {
    %c0_i32 = arith.constant 0 : i32
    %c0_i32_0 = arith.constant 0 : i32
    %c0_i32_1 = arith.constant 0 : i32
    return %c0_i32, %c0_i32_0 : i32, i32
  }
  func.func @transform_3(%arg0: i32) -> (i32, i32) {
    %c0_i32 = arith.constant 0 : i32
    %c0_i32_0 = arith.constant 0 : i32
    %c0_i32_1 = arith.constant 0 : i32
    return %c0_i32, %c0_i32_0 : i32, i32
  }
  func.func @transform_4(%arg0: i32) -> (i32, i32) {
    %c0_i32 = arith.constant 0 : i32
    %c0_i32_0 = arith.constant 0 : i32
    %c0_i32_1 = arith.constant 0 : i32
    return %c0_i32, %c0_i32_0 : i32, i32
  }
  func.func @transform_5(%arg0: i32) -> (i32, i32) {
    %c0_i32 = arith.constant 0 : i32
    %c0_i32_0 = arith.constant 0 : i32
    %c0_i32_1 = arith.constant 0 : i32
    return %c0_i32, %c0_i32_0 : i32, i32
  }
  func.func @transform_6(%arg0: i32) -> (i32, i32) {
    %c0_i32 = arith.constant 0 : i32
    %c0_i32_0 = arith.constant 0 : i32
    %c0_i32_1 = arith.constant 0 : i32
    return %c0_i32, %c0_i32_0 : i32, i32
  }
  func.func @transform_7(%arg0: i32) -> (i32, i32) {
    %c0_i32 = arith.constant 0 : i32
    %c0_i32_0 = arith.constant 0 : i32
    return %arg0, %c0_i32 : i32, i32
  }
}

</mosaic_0001>

<llo_original>
// kernel: tpu_custom_call.1
$region0: #{tpu_custom_call.1}
  #allocation0 [shape = 'u32[]', space=smem, size = 0x4, offset = 0x4, fixed_abs, tag = 'smem constant byte address 0x4 - core index']
  #allocation1 [shape = 'u32[144,128]{1,0:T(1,128)}', space=vmem, size = 0x12000, scoped, tag = 'internal scratch']
  %s0 = inlined_call_operand.vmem [shape: f32[8,8], index: 0, kind: input, shape index: {}]
  %s1 = inlined_call_operand.vmem [shape: f32[8,128], index: 1, kind: input, shape index: {}]
  %s2 = inlined_call_operand.vmem [shape: f32[1,128], index: 2, kind: input, shape index: {}]
  %s3 = inlined_call_operand.vmem [shape: f32[128,128], index: 3, kind: input, shape index: {}]
  %s4 = inlined_call_operand.vmem [shape: f32[1,128], index: 4, kind: input, shape index: {}]
  %s5 = inlined_call_operand.vmem [shape: f32[128,16], index: 5, kind: input, shape index: {}]
  %s6 = inlined_call_operand.vmem [shape: f32[1,16], index: 6, kind: input, shape index: {}]
  %s7 = inlined_call_operand.hbm [shape: f32[8,16], index: 7, kind: output, shape index: {}]
  %s8 = sld [smem:[#allocation0]]
  $region38: #{tpu_custom_call.1} parent=0
    _
  %s10 = ssub.s32 1, %s8
  %s11 = scalar_select 0, %s10, %s8
  $region1: #{tpu_custom_call.1} parent=0
    #allocation2 [shape = 'u8[4096]{0}', space=vmem, size = 0x1000, scoped, tag = 'output window, operand 0, single buffered']
    #allocation3 [shape = 's32[1]{0}', space=sflag, size = 0x4, scoped, tag = 'scoped memory for tpu_custom_call.1']
    %12 = vsyncpa [#allocation3], 0
    // Predicated region
    $region2: #{tpu_custom_call.1} parent=1 // pred_check
      _
    $region3: #{tpu_custom_call.1} parent=1 // pred_check_branch
      %14 = sbr.rel (0) target = $region5
    $region4: #{tpu_custom_call.1} parent=1 // pred_region
      _
    $region5: #{tpu_custom_call.1} parent=1 // pred_fallthru
      _
    // Predicated region
    $region6: #{tpu_custom_call.1} parent=1 // pred_check
      _
    $region7: #{tpu_custom_call.1} parent=1 // pred_check_branch
      %16 = sbr.rel (0) target = $region9
    $region8: #{tpu_custom_call.1} parent=1 // pred_region
      _
    $region9: #{tpu_custom_call.1} parent=1 // pred_fallthru
      _
    // Predicated region
    $region10: #{tpu_custom_call.1} parent=1 // pred_check
      _
    $region11: #{tpu_custom_call.1} parent=1 // pred_check_branch
      %18 = sbr.rel (0) target = $region13
    $region12: #{tpu_custom_call.1} parent=1 // pred_region
      _
    $region13: #{tpu_custom_call.1} parent=1 // pred_fallthru
      _
    // Predicated region
    $region14: #{tpu_custom_call.1} parent=1 // pred_check
      _
    $region15: #{tpu_custom_call.1} parent=1 // pred_check_branch
      %20 = sbr.rel (0) target = $region17
    $region16: #{tpu_custom_call.1} parent=1 // pred_region
      _
    $region17: #{tpu_custom_call.1} parent=1 // pred_fallthru
      _
    // Predicated region
    $region18: #{tpu_custom_call.1} parent=1 // pred_check
      _
    $region19: #{tpu_custom_call.1} parent=1 // pred_check_branch
      %22 = sbr.rel (0) target = $region21
    $region20: #{tpu_custom_call.1} parent=1 // pred_region
      _
    $region21: #{tpu_custom_call.1} parent=1 // pred_fallthru
      _
    // Predicated region
    $region22: #{tpu_custom_call.1} parent=1 // pred_check
      _
    $region23: #{tpu_custom_call.1} parent=1 // pred_check_branch
      %24 = sbr.rel (0) target = $region25
    $region24: #{tpu_custom_call.1} parent=1 // pred_region
      _
    $region25: #{tpu_custom_call.1} parent=1 // pred_fallthru
      _
    // Predicated region
    $region26: #{tpu_custom_call.1} parent=1 // pred_check
      _
    $region27: #{tpu_custom_call.1} parent=1 // pred_check_branch
      %26 = sbr.rel (0) target = $region29
    $region28: #{tpu_custom_call.1} parent=1 // pred_region
      _
    $region29: #{tpu_custom_call.1} parent=1 // pred_fallthru
      _
    %v27 = vld [vmem:[%s0] sm:$0xff]
    %v28 = vld [vmem:[%s1] sm:$0xff]
    %v29 = vld [vmem:[%s2] sm:$0x1]
    %v31 = vlaneseq
    %v32 = vshrl.u32 %v31, 7
    %v33 = vsub.s32 0, %v32
    %v34 = vrot.slane %v29, %v33
    %vm36 = vcmask 64512
    %v38 = vsel %vm36, %v27, 0
    %40 = vmatprep.subr.mxu0 0.0
    %41 = vmatpush1.msra.mxu0 %v28
    %42 = vmatprep.subr.mxu0 0.0
    %43 = vmatpush1.msra.mxu0 0.0
    %44 = vmatprep.subr.mxu0 0.0
    %45 = vmatpush1.msra.mxu0 0.0
    %46 = vmatprep.subr.mxu0 0.0
    %47 = vmatpush1.msra.mxu0 0.0
    %48 = vmatprep.subr.mxu0 0.0
    %49 = vmatpush1.msra.mxu0 0.0
    %50 = vmatprep.subr.mxu0 0.0
    %51 = vmatpush1.msra.mxu0 0.0
    %52 = vmatprep.subr.mxu0 0.0
    %53 = vmatpush1.msra.mxu0 0.0
    %54 = vmatprep.subr.mxu0 0.0
    %55 = vmatpush1.msra.mxu0 0.0
    %56 = vmatprep.subr.mxu0 0.0
    %57 = vmatpush1.msra.mxu0 0.0
    %58 = vmatprep.subr.mxu0 0.0
    %59 = vmatpush1.msra.mxu0 0.0
    %60 = vmatprep.subr.mxu0 0.0
    %61 = vmatpush1.msra.mxu0 0.0
    %62 = vmatprep.subr.mxu0 0.0
    %63 = vmatpush1.msra.mxu0 0.0
    %64 = vmatprep.subr.mxu0 0.0
    %65 = vmatpush1.msra.mxu0 0.0
    %66 = vmatprep.subr.mxu0 0.0
    %67 = vmatpush1.msra.mxu0 0.0
    %68 = vmatprep.subr.mxu0 0.0
    %69 = vmatpush1.msra.mxu0 0.0
    %70 = vmatprep.subr.mxu0 0.0
    %71 = vmatpush1.msra.mxu0 0.0
    %72 = vmatprep.subr.mxu0 0.0
    %73 = vmatpush1.msra.mxu0 0.0
    %74 = vmatprep.subr.mxu0 0.0
    %75 = vmatpush1.msra.mxu0 0.0
    %76 = vmatprep.subr.mxu0 0.0
    %77 = vmatpush1.msra.mxu0 0.0
    %78 = vmatprep.subr.mxu0 0.0
    %79 = vmatpush1.msra.mxu0 0.0
    %80 = vmatprep.subr.mxu0 0.0
    %81 = vmatpush1.msra.mxu0 0.0
    %82 = vmatprep.subr.mxu0 0.0
    %83 = vmatpush1.msra.mxu0 0.0
    %84 = vmatprep.subr.mxu0 0.0
    %85 = vmatpush1.msra.mxu0 0.0
    %86 = vmatprep.subr.mxu0 0.0
    %87 = vmatpush1.msra.mxu0 0.0
    %88 = vmatprep.subr.mxu0 0.0
    %89 = vmatpush1.msra.mxu0 0.0
    %90 = vmatprep.subr.mxu0 0.0
    %91 = vmatpush1.msra.mxu0 0.0
    %92 = vmatprep.subr.mxu0 0.0
    %93 = vmatpush1.msra.mxu0 0.0
    %94 = vmatprep.subr.mxu0 0.0
    %95 = vmatpush1.msra.mxu0 0.0
    %96 = vmatprep.subr.mxu0 0.0
    %97 = vmatpush1.msra.mxu0 0.0
    %98 = vmatprep.subr.mxu0 0.0
    %99 = vmatpush1.msra.mxu0 0.0
    %100 = vmatprep.subr.mxu0 0.0
    %101 = vmatpush1.msra.mxu0 0.0
    %102 = vmatprep.subr.mxu0 0.0
    %103 = vmatpush1.msra.mxu0 0.0
    %104 = vmatprep.mubr.f32.mxu0 0.0
    %105 = vmatmul.mubr.f32.gmra.mrb[0].mxu0 %v38
    %v106 = vpop.f32.mrb[0].mxu0
    %v107 = vadd.f32 %v34, %v106
    %v108 = vpop.f32.mrb[0].mxu0
    %109 = vdwg.mxu0
    %v110 = vtanh.pop %v107
    %v111 = vld [vmem:[%s3] sm:$0xff]
    %v112 = vld [vmem:[%s3 + $0x8] sm:$0xff]
    %v113 = vld [vmem:[%s3 + $0x10] sm:$0xff]
    %v114 = vld [vmem:[%s3 + $0x18] sm:$0xff]
    %v115 = vld [vmem:[%s3 + $0x20] sm:$0xff]
    %v116 = vld [vmem:[%s3 + $0x28] sm:$0xff]
    %v117 = vld [vmem:[%s3 + $0x30] sm:$0xff]
    %v118 = vld [vmem:[%s3 + $0x38] sm:$0xff]
    %v119 = vld [vmem:[%s3 + $0x40] sm:$0xff]
    %v120 = vld [vmem:[%s3 + $0x48] sm:$0xff]
    %v121 = vld [vmem:[%s3 + $0x50] sm:$0xff]
    %v122 = vld [vmem:[%s3 + $0x58] sm:$0xff]
    %v123 = vld [vmem:[%s3 + $0x60] sm:$0xff]
    %v124 = vld [vmem:[%s3 + $0x68] sm:$0xff]
    %v125 = vld [vmem:[%s3 + $0x70] sm:$0xff]
    %v126 = vld [vmem:[%s3 + $0x78] sm:$0xff]
    %v127 = vld [vmem:[%s4] sm:$0x1]
    %v129 = vlaneseq
    %v130 = vshrl.u32 %v129, 7
    %v131 = vsub.s32 0, %v130
    %v132 = vrot.slane %v127, %v131
    %134 = vmatprep.subr.mxu0 0.0
    %135 = vmatpush1.msra.mxu0 %v111
    %136 = vmatprep.subr.mxu0 0.0
    %137 = vmatpush1.msra.mxu0 %v112
    %138 = vmatprep.subr.mxu0 0.0
    %139 = vmatpush1.msra.mxu0 %v113
    %140 = vmatprep.subr.mxu0 0.0
    %141 = vmatpush1.msra.mxu0 %v114
    %142 = vmatprep.subr.mxu0 0.0
    %143 = vmatpush1.msra.mxu0 %v115
    %144 = vmatprep.subr.mxu0 0.0
    %145 = vmatpush1.msra.mxu0 %v116
    %146 = vmatprep.subr.mxu0 0.0
    %147 = vmatpush1.msra.mxu0 %v117
    %148 = vmatprep.subr.mxu0 0.0
    %149 = vmatpush1.msra.mxu0 %v118
    %150 = vmatprep.subr.mxu0 0.0
    %151 = vmatpush1.msra.mxu0 %v119
    %152 = vmatprep.subr.mxu0 0.0
    %153 = vmatpush1.msra.mxu0 %v120
    %154 = vmatprep.subr.mxu0 0.0
    %155 = vmatpush1.msra.mxu0 %v121
    %156 = vmatprep.subr.mxu0 0.0
    %157 = vmatpush1.msra.mxu0 %v122
    %158 = vmatprep.subr.mxu0 0.0
    %159 = vmatpush1.msra.mxu0 %v123
    %160 = vmatprep.subr.mxu0 0.0
    %161 = vmatpush1.msra.mxu0 %v124
    %162 = vmatprep.subr.mxu0 0.0
    %163 = vmatpush1.msra.mxu0 %v125
    %164 = vmatprep.subr.mxu0 0.0
    %165 = vmatpush1.msra.mxu0 %v126
    %166 = vmatprep.subr.mxu0 0.0
    %167 = vmatpush1.msra.mxu0 0.0
    %168 = vmatprep.subr.mxu0 0.0
    %169 = vmatpush1.msra.mxu0 0.0
    %170 = vmatprep.subr.mxu0 0.0
    %171 = vmatpush1.msra.mxu0 0.0
    %172 = vmatprep.subr.mxu0 0.0
    %173 = vmatpush1.msra.mxu0 0.0
    %174 = vmatprep.subr.mxu0 0.0
    %175 = vmatpush1.msra.mxu0 0.0
    %176 = vmatprep.subr.mxu0 0.0
    %177 = vmatpush1.msra.mxu0 0.0
    %178 = vmatprep.subr.mxu0 0.0
    %179 = vmatpush1.msra.mxu0 0.0
    %180 = vmatprep.subr.mxu0 0.0
    %181 = vmatpush1.msra.mxu0 0.0
    %182 = vmatprep.subr.mxu0 0.0
    %183 = vmatpush1.msra.mxu0 0.0
    %184 = vmatprep.subr.mxu0 0.0
    %185 = vmatpush1.msra.mxu0 0.0
    %186 = vmatprep.subr.mxu0 0.0
    %187 = vmatpush1.msra.mxu0 0.0
    %188 = vmatprep.subr.mxu0 0.0
    %189 = vmatpush1.msra.mxu0 0.0
    %190 = vmatprep.subr.mxu0 0.0
    %191 = vmatpush1.msra.mxu0 0.0
    %192 = vmatprep.subr.mxu0 0.0
    %193 = vmatpush1.msra.mxu0 0.0
    %194 = vmatprep.subr.mxu0 0.0
    %195 = vmatpush1.msra.mxu0 0.0
    %196 = vmatprep.subr.mxu0 0.0
    %197 = vmatpush1.msra.mxu0 0.0
    %198 = vmatprep.mubr.f32.mxu0 0.0
    %199 = vmatmul.mubr.f32.gmra.mrb[0].mxu0 %v110
    %v200 = vpop.f32.mrb[0].mxu0
    %v201 = vadd.f32 %v132, %v200
    %v202 = vpop.f32.mrb[0].mxu0
    %203 = vdwg.mxu0
    %v204 = vtanh.pop %v201
    %v205 = vadd.f32 %v204, %v110
    %v206 = vld [vmem:[%s5] sm:$0xff]
    %v207 = vld [vmem:[%s5 + $0x8] sm:$0xff]
    %v208 = vld [vmem:[%s5 + $0x10] sm:$0xff]
    %v209 = vld [vmem:[%s5 + $0x18] sm:$0xff]
    %v210 = vld [vmem:[%s5 + $0x20] sm:$0xff]
    %v211 = vld [vmem:[%s5 + $0x28] sm:$0xff]
    %v212 = vld [vmem:[%s5 + $0x30] sm:$0xff]
    %v213 = vld [vmem:[%s5 + $0x38] sm:$0xff]
    %v214 = vld [vmem:[%s5 + $0x40] sm:$0xff]
    %v215 = vld [vmem:[%s5 + $0x48] sm:$0xff]
    %v216 = vld [vmem:[%s5 + $0x50] sm:$0xff]
    %v217 = vld [vmem:[%s5 + $0x58] sm:$0xff]
    %v218 = vld [vmem:[%s5 + $0x60] sm:$0xff]
    %v219 = vld [vmem:[%s5 + $0x68] sm:$0xff]
    %v220 = vld [vmem:[%s5 + $0x70] sm:$0xff]
    %v221 = vld [vmem:[%s5 + $0x78] sm:$0xff]
    %v222 = vld [vmem:[%s6] sm:$0x1]
    %v224 = vlaneseq
    %v225 = vshrl.u32 %v224, 7
    %v226 = vsub.s32 0, %v225
    %v227 = vrot.slane %v222, %v226
    %229 = vmatprep.subr.mxu0 0.0
    %230 = vmatpush1.msra.mxu0 %v206
    %231 = vmatprep.subr.mxu0 0.0
    %232 = vmatpush1.msra.mxu0 %v207
    %233 = vmatprep.subr.mxu0 0.0
    %234 = vmatpush1.msra.mxu0 %v208
    %235 = vmatprep.subr.mxu0 0.0
    %236 = vmatpush1.msra.mxu0 %v209
    %237 = vmatprep.subr.mxu0 0.0
    %238 = vmatpush1.msra.mxu0 %v210
    %239 = vmatprep.subr.mxu0 0.0
    %240 = vmatpush1.msra.mxu0 %v211
    %241 = vmatprep.subr.mxu0 0.0
    %242 = vmatpush1.msra.mxu0 %v212
    %243 = vmatprep.subr.mxu0 0.0
    %244 = vmatpush1.msra.mxu0 %v213
    %245 = vmatprep.subr.mxu0 0.0
    %246 = vmatpush1.msra.mxu0 %v214
    %247 = vmatprep.subr.mxu0 0.0
    %248 = vmatpush1.msra.mxu0 %v215
    %249 = vmatprep.subr.mxu0 0.0
    %250 = vmatpush1.msra.mxu0 %v216
    %251 = vmatprep.subr.mxu0 0.0
    %252 = vmatpush1.msra.mxu0 %v217
    %253 = vmatprep.subr.mxu0 0.0
    %254 = vmatpush1.msra.mxu0 %v218
    %255 = vmatprep.subr.mxu0 0.0
    %256 = vmatpush1.msra.mxu0 %v219
    %257 = vmatprep.subr.mxu0 0.0
    %258 = vmatpush1.msra.mxu0 %v220
    %259 = vmatprep.subr.mxu0 0.0
    %260 = vmatpush1.msra.mxu0 %v221
    %261 = vmatprep.subr.mxu0 0.0
    %262 = vmatpush1.msra.mxu0 0.0
    %263 = vmatprep.subr.mxu0 0.0
    %264 = vmatpush1.msra.mxu0 0.0
    %265 = vmatprep.subr.mxu0 0.0
    %266 = vmatpush1.msra.mxu0 0.0
    %267 = vmatprep.subr.mxu0 0.0
    %268 = vmatpush1.msra.mxu0 0.0
    %269 = vmatprep.subr.mxu0 0.0
    %270 = vmatpush1.msra.mxu0 0.0
    %271 = vmatprep.subr.mxu0 0.0
    %272 = vmatpush1.msra.mxu0 0.0
    %273 = vmatprep.subr.mxu0 0.0
    %274 = vmatpush1.msra.mxu0 0.0
    %275 = vmatprep.subr.mxu0 0.0
    %276 = vmatpush1.msra.mxu0 0.0
    %277 = vmatprep.subr.mxu0 0.0
    %278 = vmatpush1.msra.mxu0 0.0
    %279 = vmatprep.subr.mxu0 0.0
    %280 = vmatpush1.msra.mxu0 0.0
    %281 = vmatprep.subr.mxu0 0.0
    %282 = vmatpush1.msra.mxu0 0.0
    %283 = vmatprep.subr.mxu0 0.0
    %284 = vmatpush1.msra.mxu0 0.0
    %285 = vmatprep.subr.mxu0 0.0
    %286 = vmatpush1.msra.mxu0 0.0
    %287 = vmatprep.subr.mxu0 0.0
    %288 = vmatpush1.msra.mxu0 0.0
    %289 = vmatprep.subr.mxu0 0.0
    %290 = vmatpush1.msra.mxu0 0.0
    %291 = vmatprep.subr.mxu0 0.0
    %292 = vmatpush1.msra.mxu0 0.0
    %293 = vmatprep.mubr.f32.mxu0 0.0
    %294 = vmatmul.mubr.f32.gmra.mrb[0].mxu0 %v205
    %v295 = vpop.f32.mrb[0].mxu0
    %v296 = vadd.f32 %v227, %v295
    %v297 = vpop.f32.mrb[0].mxu0
    %298 = vdwg.mxu0
    %vm299 = vcmask 130048
    %300 = vst.msk [vmem:[#allocation2] sm:$0xff] %vm299, %v296
    // Predicated region
    $region30: #{tpu_custom_call.1} parent=1 // pred_check
      _
    $region31: #{tpu_custom_call.1} parent=1 // pred_check_branch
      %302 = sbr.rel (0) target = $region33
    $region32: #{tpu_custom_call.1} parent=1 // pred_region
      %s304 = ssub.s32 128, 128
      %305 = vsyncadd [#allocation3], %s304
      %s307 = sshll.u32 [#allocation2], 4
      %s308 = int_to_ptr.vmem [resolvable:$true] %s307
      %310 = dma.vmem_to_hbm [thread:$0]  %s308, 128, %s7, [#allocation3]
    $region33: #{tpu_custom_call.1} parent=1 // pred_fallthru
      _
    // Predicated region
    $region34: #{tpu_custom_call.1} parent=1 // pred_check
      _
    $region35: #{tpu_custom_call.1} parent=1 // pred_check_branch
      %312 = sbr.rel (0) target = $region37
    $region36: #{tpu_custom_call.1} parent=1 // pred_region
      %313 = dma.done [#allocation3], 128
    $region37: #{tpu_custom_call.1} parent=1 // pred_fallthru
      _
    %314 = vsyncpa [#allocation3], 1

</llo_original>
